<compile_context>
chip_gen: v5e
topology: v5e:2x2
jax: 0.10.0
libtpu: 0.0.40
codegen_flags: <defaults>
</compile_context>

<pallas_src>
import functools

import jax
import jax.numpy as jnp
from jax.experimental import pallas as pl
from jax.experimental.pallas import tpu as pltpu


def _round_up(v, m):
    return ((v + m - 1) // m) * m


def _patch_matmul_kernel(a_ref, b_ref, o_ref):
    # Single-shot GEMM per M-tile: the whole K reduction fits in one MXU call,
    # so no accumulator scratch and no K grid axis are needed.
    o_ref[...] = jnp.dot(a_ref[...], b_ref[...],
                         preferred_element_type=jnp.float32).astype(o_ref.dtype)


def _pick_tm(M, K, Ep, itemsize, vmem_budget=10 * 1024 * 1024):
    """Largest row tile keeping double-buffered A/out tiles + resident B under budget."""
    resident_b = 2 * K * Ep * itemsize            # B block (at most 2 buffers)
    per_row = 2 * (K + Ep) * itemsize             # double-buffered A row + out row
    tm = (vmem_budget - resident_b) // per_row
    tm = max(8, min(2048, (tm // 8) * 8))
    if M <= tm:                                   # one tile covers every row
        tm = max(8, _round_up(M, 8))
    return tm


def _patch_matmul(a, b_padded):
    """a: [M, K] patches, b_padded: [K, Ep] with Ep % 128 == 0 -> [M, Ep]."""
    M, K = a.shape
    K2, Ep = b_padded.shape
    assert K == K2 and Ep % 128 == 0
    itemsize = max(jnp.dtype(a.dtype).itemsize, 4)
    tm = _pick_tm(M, K, Ep, itemsize)

    grid = (pl.cdiv(M, tm),)
    return pl.pallas_call(
        _patch_matmul_kernel,
        out_shape=jax.ShapeDtypeStruct((M, Ep), a.dtype),
        grid_spec=pltpu.PrefetchScalarGridSpec(
            num_scalar_prefetch=0,
            grid=grid,
            in_specs=[
                # A tile: full-extent K block (no K-padding copy of the slab).
                pl.BlockSpec((tm, K), lambda i: (i, 0)),
                # B: constant block index -> DMAed once, stays resident in VMEM.
                pl.BlockSpec((K, Ep), lambda i: (0, 0)),
            ],
            out_specs=pl.BlockSpec((tm, Ep), lambda i: (i, 0)),
        ),
        compiler_params=pltpu.CompilerParams(
            dimension_semantics=("parallel",)),
    )(a, b_padded)


@functools.partial(jax.jit, static_argnames=("patch_size",))
def patch_embed_3d(x, weight, patch_size=(2, 4, 4)):
    """PatchEmbed3D.forward.

    x:      [N, C, D, H, W]    (NCDHW, like PyTorch)
    weight: [E, C, pd, ph, pw] (Conv3d weight, bias=False)
    returns [N, E, D//pd, H//ph, W//pw] (after right-side zero padding of D/H/W)
    """
    N, C, D, H, W = x.shape
    pd, ph, pw = patch_size
    E = weight.shape[0]

    # Same padding semantics as the torch F.pad calls (zero-pad on the right).
    pad_d = (-D) % pd
    pad_h = (-H) % ph
    pad_w = (-W) % pw
    if pad_d or pad_h or pad_w:
        x = jnp.pad(x, ((0, 0), (0, 0), (0, pad_d), (0, pad_h), (0, pad_w)))
    Dp, Hp, Wp = D + pad_d, H + pad_h, W + pad_w
    Do, Ho, Wo = Dp // pd, Hp // ph, Wp // pw

    # Non-overlapping patch extraction (kernel == stride): one layout pass.
    # TODO(synk): fusing this transpose into the Pallas A-stream (tiling the
    # padded NCDHW tensor directly in the BlockSpec) would save one full HBM
    # round trip; kept wrapper-side for robustness.
    xp = x.reshape(N, C, Do, pd, Ho, ph, Wo, pw)
    xp = xp.transpose(0, 2, 4, 6, 1, 3, 5, 7)        # [N, Do, Ho, Wo, C, pd, ph, pw]
    M = N * Do * Ho * Wo
    K = C * pd * ph * pw
    a = xp.reshape(M, K)                             # patches slab [M, K]

    # Weight -> [K, E], zero-padded to lane-dense Ep = round_up(E, 128) so the
    # output store is an unmasked full-lane vst (cheap: weight is tiny).
    Ep = _round_up(E, 128)
    b = weight.reshape(E, K).T                       # [K, E]
    if Ep != E:
        b = jnp.pad(b, ((0, 0), (0, Ep - E)))

    out = _patch_matmul(a, b)                        # [M, Ep] -- the hot path
    out = out[:, :E].reshape(N, Do, Ho, Wo, E).transpose(0, 4, 1, 2, 3)
    # TODO(synk): norm_layer path (LayerNorm, elementwise_affine=False) is not
    # exercised by the module default (norm_layer=None) and is omitted here.
    return out


if __name__ == "__main__":
    key = jax.random.PRNGKey(0)
    kx, kw = jax.random.split(key)

    # Small shapes consistent with the module: patch (2,4,4), in_chans=4, embed_dim=32.
    N, C, D, H, W = 2, 4, 4, 16, 16
    patch_size = (2, 4, 4)
    E = 32

    x = jax.random.normal(kx, (N, C, D, H, W), dtype=jnp.float32)
    fan_in = C * patch_size[0] * patch_size[1] * patch_size[2]
    weight = jax.random.normal(kw, (E, C, *patch_size), dtype=jnp.float32) / jnp.sqrt(fan_in)

    out = patch_embed_3d(x, weight, patch_size=patch_size)
    out = jax.block_until_ready(out)

    # Cross-check against XLA's conv (same semantics as nn.Conv3d, bias=False).
    ref = jax.lax.conv_general_dilated(
        x, weight, window_strides=patch_size, padding="VALID",
        dimension_numbers=("NCDHW", "OIDHW", "NCDHW"))
    assert out.shape == ref.shape == (N, E, D // patch_size[0], H // patch_size[1], W // patch_size[2])
    assert jnp.allclose(out, ref, atol=1e-4, rtol=1e-4)

    print("KERNEL_OK")
</pallas_src>

<mosaic_0001>
module attributes {stable_mosaic.version = 11 : i64} {
  func.func @_patch_matmul_kernel(%arg0: i32, %arg1: memref<64x128xf32, #tpu.memory_space<vmem>>, %arg2: memref<128x128xf32, #tpu.memory_space<vmem>>, %arg3: memref<64x128xf32, #tpu.memory_space<vmem>>) attributes {dimension_semantics = [#tpu.dimension_semantics<parallel>], iteration_bounds = array<i64: 1>, scalar_prefetch = 0 : i64, scratch_operands = 0 : i64, tpu.core_type = #tpu.core_type<tc>, window_params = [{transform_indices = @transform_0, window_bounds = array<i64: 64, 128>}, {pipeline_mode = #tpu.pipeline_mode<synchronous>, transform_indices = @transform_1, window_bounds = array<i64: 128, 128>}, {transform_indices = @transform_2, window_bounds = array<i64: 64, 128>}]} {
    %c0 = arith.constant 0 : index
    %c0_0 = arith.constant 0 : index
    %0 = vector.load %arg1[%c0, %c0_0] : memref<64x128xf32, #tpu.memory_space<vmem>>, vector<64x128xf32>
    %c0_1 = arith.constant 0 : index
    %c0_2 = arith.constant 0 : index
    %1 = vector.load %arg2[%c0_1, %c0_2] : memref<128x128xf32, #tpu.memory_space<vmem>>, vector<128x128xf32>
    %cst = arith.constant dense<0.000000e+00> : vector<64x128xf32>
    %2 = tpu.matmul %0, %1, %cst {dimension_numbers = #tpu.dot_dimension_numbers<[1], [0], [0], [1], [0, 0, 1, 1], [], []>} : vector<64x128xf32>, vector<128x128xf32>, vector<64x128xf32> -> vector<64x128xf32>
    %c0_3 = arith.constant 0 : index
    %c0_4 = arith.constant 0 : index
    %3 = vector.load %arg3[%c0_3, %c0_4] : memref<64x128xf32, #tpu.memory_space<vmem>>, vector<64x128xf32>
    tpu.vector_store %arg3[%c0_3, %c0_4], %2 {strides = array<i32>} : memref<64x128xf32, #tpu.memory_space<vmem>>, vector<64x128xf32>,
    return
  }
  func.func @transform_0(%arg0: i32) -> (i32, i32) {
    %c0_i32 = arith.constant 0 : i32
    %c0_i32_0 = arith.constant 0 : i32
    return %arg0, %c0_i32 : i32, i32
  }
  func.func @transform_1(%arg0: i32) -> (i32, i32) {
    %c0_i32 = arith.constant 0 : i32
    %c0_i32_0 = arith.constant 0 : i32
    %c0_i32_1 = arith.constant 0 : i32
    return %c0_i32, %c0_i32_0 : i32, i32
  }
  func.func @transform_2(%arg0: i32) -> (i32, i32) {
    %c0_i32 = arith.constant 0 : i32
    %c0_i32_0 = arith.constant 0 : i32
    return %arg0, %c0_i32 : i32, i32
  }
}

</mosaic_0001>

<llo_original>
// kernel: patch_embed_3d.1
$region0: #{patch_embed_3d.1}
  #allocation0 [shape = 'u32[]', space=smem, size = 0x4, offset = 0x4, fixed_abs, tag = 'smem constant byte address 0x4 - core index']
  #allocation1 [shape = 'u32[72,128]{1,0:T(1,128)}', space=vmem, size = 0x9000, scoped, tag = 'internal scratch']
  %s0 = inlined_call_operand.vmem [shape: f32[64,128], index: 0, kind: input, shape index: {}]
  %s1 = inlined_call_operand.vmem [shape: f32[128,128], index: 1, kind: input, shape index: {}]
  %s2 = inlined_call_operand.hbm [shape: f32[64,128], index: 2, kind: output, shape index: {}]
  %s3 = sld [smem:[#allocation0]]
  $region18: #{patch_embed_3d.1} parent=0
    _
  %s5 = ssub.s32 1, %s3
  %s6 = scalar_select 0, %s5, %s3
  $region1: #{patch_embed_3d.1} parent=0
    #allocation2 [shape = 'u8[32768]{0}', space=vmem, size = 0x8000, scoped, tag = 'output window, operand 0, single buffered']
    #allocation3 [shape = 's32[1]{0}', space=sflag, size = 0x4, scoped, tag = 'scoped memory for patch_embed_3d.1']
    %7 = vsyncpa [#allocation3], 0
    // Predicated region
    $region2: #{patch_embed_3d.1} parent=1 // pred_check
      _
    $region3: #{patch_embed_3d.1} parent=1 // pred_check_branch
      %9 = sbr.rel (0) target = $region5
    $region4: #{patch_embed_3d.1} parent=1 // pred_region
      _
    $region5: #{patch_embed_3d.1} parent=1 // pred_fallthru
      _
    // Predicated region
    $region6: #{patch_embed_3d.1} parent=1 // pred_check
      _
    $region7: #{patch_embed_3d.1} parent=1 // pred_check_branch
      %11 = sbr.rel (0) target = $region9
    $region8: #{patch_embed_3d.1} parent=1 // pred_region
      _
    $region9: #{patch_embed_3d.1} parent=1 // pred_fallthru
      _
    %v12 = vld [vmem:[%s0] sm:$0xff]
    %v13 = vld [vmem:[%s0 + $0x8] sm:$0xff]
    %v14 = vld [vmem:[%s0 + $0x10] sm:$0xff]
    %v15 = vld [vmem:[%s0 + $0x18] sm:$0xff]
    %v16 = vld [vmem:[%s0 + $0x20] sm:$0xff]
    %v17 = vld [vmem:[%s0 + $0x28] sm:$0xff]
    %v18 = vld [vmem:[%s0 + $0x30] sm:$0xff]
    %v19 = vld [vmem:[%s0 + $0x38] sm:$0xff]
    %v20 = vld [vmem:[%s1] sm:$0xff]
    %v21 = vld [vmem:[%s1 + $0x8] sm:$0xff]
    %v22 = vld [vmem:[%s1 + $0x10] sm:$0xff]
    %v23 = vld [vmem:[%s1 + $0x18] sm:$0xff]
    %v24 = vld [vmem:[%s1 + $0x20] sm:$0xff]
    %v25 = vld [vmem:[%s1 + $0x28] sm:$0xff]
    %v26 = vld [vmem:[%s1 + $0x30] sm:$0xff]
    %v27 = vld [vmem:[%s1 + $0x38] sm:$0xff]
    %v28 = vld [vmem:[%s1 + $0x40] sm:$0xff]
    %v29 = vld [vmem:[%s1 + $0x48] sm:$0xff]
    %v30 = vld [vmem:[%s1 + $0x50] sm:$0xff]
    %v31 = vld [vmem:[%s1 + $0x58] sm:$0xff]
    %v32 = vld [vmem:[%s1 + $0x60] sm:$0xff]
    %v33 = vld [vmem:[%s1 + $0x68] sm:$0xff]
    %v34 = vld [vmem:[%s1 + $0x70] sm:$0xff]
    %v35 = vld [vmem:[%s1 + $0x78] sm:$0xff]
    %36 = vmatpush.msra.mxu0 %v35
    %37 = vmatpush.msra.mxu0 %v34
    %38 = vmatpush.msra.mxu0 %v33
    %39 = vmatpush.msra.mxu0 %v32
    %40 = vmatpush.msra.mxu0 %v31
    %41 = vmatpush.msra.mxu0 %v30
    %42 = vmatpush.msra.mxu0 %v29
    %43 = vmatpush.msra.mxu0 %v28
    %44 = vmatpush.msra.mxu0 %v27
    %45 = vmatpush.msra.mxu0 %v26
    %46 = vmatpush.msra.mxu0 %v25
    %47 = vmatpush.msra.mxu0 %v24
    %48 = vmatpush.msra.mxu0 %v23
    %49 = vmatpush.msra.mxu0 %v22
    %50 = vmatpush.msra.mxu0 %v21
    %51 = vmatpush.msra.mxu0 %v20
    %52 = vmatmul.f32.gmra.mxu0 %v12
    %v53 = vpop.f32.mrf.mxu0
    %v54 = vadd.f32 0.0, %v53
    %55 = vmatmul.f32.gmra.mxu0 %v13
    %v56 = vpop.f32.mrf.mxu0
    %v57 = vadd.f32 0.0, %v56
    %58 = vmatmul.f32.gmra.mxu0 %v14
    %v59 = vpop.f32.mrf.mxu0
    %v60 = vadd.f32 0.0, %v59
    %61 = vmatmul.f32.gmra.mxu0 %v15
    %v62 = vpop.f32.mrf.mxu0
    %v63 = vadd.f32 0.0, %v62
    %64 = vmatmul.f32.gmra.mxu0 %v16
    %v65 = vpop.f32.mrf.mxu0
    %v66 = vadd.f32 0.0, %v65
    %67 = vmatmul.f32.gmra.mxu0 %v17
    %v68 = vpop.f32.mrf.mxu0
    %v69 = vadd.f32 0.0, %v68
    %70 = vmatmul.f32.gmra.mxu0 %v18
    %v71 = vpop.f32.mrf.mxu0
    %v72 = vadd.f32 0.0, %v71
    %73 = vmatmul.f32.gmra.mxu0 %v19
    %v74 = vpop.f32.mrf.mxu0
    %v75 = vadd.f32 0.0, %v74
    %76 = vdwg.mxu0
    %77 = vst [vmem:[#allocation2] sm:$0xff] %v54
    %78 = vst [vmem:[#allocation2 + $0x8] sm:$0xff] %v57
    %79 = vst [vmem:[#allocation2 + $0x10] sm:$0xff] %v60
    %80 = vst [vmem:[#allocation2 + $0x18] sm:$0xff] %v63
    %81 = vst [vmem:[#allocation2 + $0x20] sm:$0xff] %v66
    %82 = vst [vmem:[#allocation2 + $0x28] sm:$0xff] %v69
    %83 = vst [vmem:[#allocation2 + $0x30] sm:$0xff] %v72
    %84 = vst [vmem:[#allocation2 + $0x38] sm:$0xff] %v75
    // Predicated region
    $region10: #{patch_embed_3d.1} parent=1 // pred_check
      _
    $region11: #{patch_embed_3d.1} parent=1 // pred_check_branch
      %86 = sbr.rel (0) target = $region13
    $region12: #{patch_embed_3d.1} parent=1 // pred_region
      %88 = vsyncadd [#allocation3], 0
      %s89 = sshll.u32 [#allocation2], 4
      %s90 = int_to_ptr.vmem [resolvable:$true] %s89
      %s91 = sshll.u32 %s2, 4
      %s92 = int_to_ptr.hbm [resolvable:$true] %s91
      %97 = dma.vmem_to_hbm [thread:$0]  %s90, 1024, %s92, [#allocation3], 128, 128, 8
    $region13: #{patch_embed_3d.1} parent=1 // pred_fallthru
      _
    // Predicated region
    $region14: #{patch_embed_3d.1} parent=1 // pred_check
      _
    $region15: #{patch_embed_3d.1} parent=1 // pred_check_branch
      %99 = sbr.rel (0) target = $region17
    $region16: #{patch_embed_3d.1} parent=1 // pred_region
      %101 = dma.done [#allocation3], 1024
    $region17: #{patch_embed_3d.1} parent=1 // pred_fallthru
      _
    %102 = vsyncpa [#allocation3], 1

</llo_original>
